<compile_context>
chip_gen: v5e
topology: v5e:2x2
jax: 0.10.0
libtpu: 0.0.40
codegen_flags: <defaults>
</compile_context>

<pallas_src>
import functools

import jax
import jax.numpy as jnp
from jax.experimental import pallas as pl
from jax.experimental.pallas import tpu as pltpu


def _layernorm2d_kernel(x_ref, gamma_ref, beta_ref, o_ref, *, eps):
    # x_ref:     (C, THW)  one batch element, one spatial tile (C on sublanes)
    # gamma_ref: (C, 1)    per-channel scale (resident)
    # beta_ref:  (C, 1)    per-channel shift (resident)
    # o_ref:     (C, THW)  output tile
    xf = x_ref[...].astype(jnp.float32)                       # f32 math for LN
    mu = jnp.mean(xf, axis=0, keepdims=True)                  # (1, THW)
    centered = xf - mu
    var = jnp.mean(centered * centered, axis=0, keepdims=True)  # biased variance
    inv = jax.lax.rsqrt(var + eps)
    out = centered * inv * gamma_ref[...] + beta_ref[...]      # (C,1) broadcasts
    o_ref[...] = out.astype(o_ref.dtype)


def _choose_spatial_tile(C, HW, itemsize):
    """Pick a lane-tile for the spatial axis.

    Must be a multiple of 128 (or the full extent if HW is ragged). Budget
    ~2 MiB per x buffer so double-buffered input + output (~8 MiB total) fits
    comfortably under v5e's 16 MiB default scoped VMEM (and v7x's 32/64 MiB).
    """
    if HW % 128 != 0:
        return HW  # ragged spatial extent: use the full (un-tiled) axis
    budget = 2 * 1024 * 1024
    max_lanes = max(128, (budget // max(C * itemsize, 1)) // 128 * 128)
    tile = min(HW, max_lanes)
    while HW % tile != 0:  # keep the grid exact (no ragged last block)
        tile -= 128
    return tile


def layernorm2d(x_nchw, gamma, beta, *, eps=1e-5):
    """x_nchw: (N, C, H, W); gamma, beta: (C,). Returns (N, C, H, W)."""
    N, C, H, W = x_nchw.shape
    HW = H * W

    x = x_nchw.reshape(N, C, HW)                 # free reshape, NCHW-contiguous
    g = gamma.reshape(C, 1).astype(jnp.float32)
    b = beta.reshape(C, 1).astype(jnp.float32)

    thw = _choose_spatial_tile(C, HW, x.dtype.itemsize)
    grid = (N, HW // thw)

    out = pl.pallas_call(
        functools.partial(_layernorm2d_kernel, eps=eps),
        out_shape=jax.ShapeDtypeStruct((N, C, HW), x_nchw.dtype),
        grid=grid,
        in_specs=[
            # x: batch dim squeezed out of the kernel view; tile the lane axis.
            pl.BlockSpec((None, C, thw), lambda n, s: (n, 0, s)),
            # gamma/beta: constant block index -> fetched once, stay resident.
            pl.BlockSpec((C, 1), lambda n, s: (0, 0)),
            pl.BlockSpec((C, 1), lambda n, s: (0, 0)),
        ],
        out_specs=pl.BlockSpec((None, C, thw), lambda n, s: (n, 0, s)),
        compiler_params=pltpu.CompilerParams(
            dimension_semantics=("parallel", "parallel"),
            vmem_limit_bytes=32 * 1024 * 1024,
        ),
    )(x, g, b)

    return out.reshape(N, C, H, W)


def reference(x_nchw, gamma, beta, eps=1e-5):
    xt = jnp.transpose(x_nchw, (0, 2, 3, 1))                   # NHWC
    mu = jnp.mean(xt, axis=-1, keepdims=True)
    var = jnp.mean((xt - mu) ** 2, axis=-1, keepdims=True)
    y = (xt - mu) / jnp.sqrt(var + eps) * gamma + beta
    return jnp.transpose(y, (0, 3, 1, 2))                      # back to NCHW


if __name__ == "__main__":
    # Small shapes consistent with the module: batch=2, channels=8, spatial 16x16.
    N, C, H, W = 2, 8, 16, 16

    key = jax.random.PRNGKey(0)
    kx, kg, kb = jax.random.split(key, 3)

    x = jax.random.normal(kx, (N, C, H, W), dtype=jnp.float32)
    gamma = jnp.ones((C,), dtype=jnp.float32) + 0.05 * jax.random.normal(kg, (C,))
    beta = 0.05 * jax.random.normal(kb, (C,), dtype=jnp.float32)

    out = layernorm2d(x, gamma, beta)
    out = jax.block_until_ready(out)

    ref = reference(x, gamma, beta)
    assert out.shape == (N, C, H, W), out.shape
    assert jnp.allclose(out, ref, atol=1e-4, rtol=1e-4), (
        f"max err {jnp.max(jnp.abs(out - ref))}"
    )
    print("KERNEL_OK")
</pallas_src>

<mosaic_0001>
module attributes {stable_mosaic.version = 11 : i64} {
  func.func @_layernorm2d_kernel(%arg0: i32, %arg1: i32, %arg2: memref<1x8x256xf32, #tpu.memory_space<vmem>>, %arg3: memref<8x1xf32, #tpu.memory_space<vmem>>, %arg4: memref<8x1xf32, #tpu.memory_space<vmem>>, %arg5: memref<1x8x256xf32, #tpu.memory_space<vmem>>) attributes {dimension_semantics = [#tpu.dimension_semantics<parallel>, #tpu.dimension_semantics<parallel>], iteration_bounds = array<i64: 2, 1>, scalar_prefetch = 0 : i64, scratch_operands = 0 : i64, tpu.core_type = #tpu.core_type<tc>, window_params = [{transform_indices = @transform_0, window_bounds = array<i64: 1, 8, 256>}, {pipeline_mode = #tpu.pipeline_mode<synchronous>, transform_indices = @transform_1, window_bounds = array<i64: 8, 1>}, {pipeline_mode = #tpu.pipeline_mode<synchronous>, transform_indices = @transform_2, window_bounds = array<i64: 8, 1>}, {transform_indices = @transform_3, window_bounds = array<i64: 1, 8, 256>}]} {
    %c0 = arith.constant 0 : index
    %c0_0 = arith.constant 0 : index
    %c0_1 = arith.constant 0 : index
    %0 = vector.load %arg2[%c0, %c0_0, %c0_1] : memref<1x8x256xf32, #tpu.memory_space<vmem>>, vector<1x8x256xf32>
    %1 = vector.shape_cast %0 : vector<1x8x256xf32> to vector<8x256xf32>
    %cst = arith.constant dense<0.000000e+00> : vector<256xf32>
    %2 = vector.multi_reduction <add>, %1, %cst [0] : vector<8x256xf32> to vector<256xf32>
    %3 = vector.shape_cast %2 : vector<256xf32> to vector<1x256xf32>
    %cst_2 = arith.constant 8.000000e+00 : f32
    %4 = vector.broadcast %cst_2 : f32 to vector<1x256xf32>
    %5 = arith.divf %3, %4 : vector<1x256xf32>
    %6 = vector.broadcast %5 : vector<1x256xf32> to vector<8x256xf32>
    %7 = arith.subf %1, %6 : vector<8x256xf32>
    %8 = arith.mulf %7, %7 : vector<8x256xf32>
    %cst_3 = arith.constant dense<0.000000e+00> : vector<256xf32>
    %9 = vector.multi_reduction <add>, %8, %cst_3 [0] : vector<8x256xf32> to vector<256xf32>
    %10 = vector.shape_cast %9 : vector<256xf32> to vector<1x256xf32>
    %cst_4 = arith.constant 8.000000e+00 : f32
    %11 = vector.broadcast %cst_4 : f32 to vector<1x256xf32>
    %12 = arith.divf %10, %11 : vector<1x256xf32>
    %cst_5 = arith.constant 9.99999974E-6 : f32
    %13 = vector.broadcast %cst_5 : f32 to vector<1x256xf32>
    %14 = arith.addf %12, %13 : vector<1x256xf32>
    %15 = math.rsqrt %14 : vector<1x256xf32>
    %16 = vector.broadcast %15 : vector<1x256xf32> to vector<8x256xf32>
    %17 = arith.mulf %7, %16 : vector<8x256xf32>
    %c0_6 = arith.constant 0 : index
    %c0_7 = arith.constant 0 : index
    %18 = vector.load %arg3[%c0_6, %c0_7] : memref<8x1xf32, #tpu.memory_space<vmem>>, vector<8x1xf32>
    %19 = vector.broadcast %18 : vector<8x1xf32> to vector<8x256xf32>
    %20 = arith.mulf %17, %19 : vector<8x256xf32>
    %c0_8 = arith.constant 0 : index
    %c0_9 = arith.constant 0 : index
    %21 = vector.load %arg4[%c0_8, %c0_9] : memref<8x1xf32, #tpu.memory_space<vmem>>, vector<8x1xf32>
    %22 = vector.broadcast %21 : vector<8x1xf32> to vector<8x256xf32>
    %23 = arith.addf %20, %22 : vector<8x256xf32>
    %c0_10 = arith.constant 0 : index
    %c0_11 = arith.constant 0 : index
    %c0_12 = arith.constant 0 : index
    %24 = vector.load %arg5[%c0_10, %c0_11, %c0_12] : memref<1x8x256xf32, #tpu.memory_space<vmem>>, vector<1x8x256xf32>
    %25 = vector.shape_cast %24 : vector<1x8x256xf32> to vector<8x256xf32>
    %26 = vector.shape_cast %23 : vector<8x256xf32> to vector<1x8x256xf32>
    tpu.vector_store %arg5[%c0_10, %c0_11, %c0_12], %26 {strides = array<i32>} : memref<1x8x256xf32, #tpu.memory_space<vmem>>, vector<1x8x256xf32>,
    return
  }
  func.func @transform_0(%arg0: i32, %arg1: i32) -> (i32, i32, i32) {
    %c0_i32 = arith.constant 0 : i32
    %c0_i32_0 = arith.constant 0 : i32
    return %arg0, %c0_i32, %arg1 : i32, i32, i32
  }
  func.func @transform_1(%arg0: i32, %arg1: i32) -> (i32, i32) {
    %c0_i32 = arith.constant 0 : i32
    %c0_i32_0 = arith.constant 0 : i32
    %c0_i32_1 = arith.constant 0 : i32
    return %c0_i32, %c0_i32_0 : i32, i32
  }
  func.func @transform_2(%arg0: i32, %arg1: i32) -> (i32, i32) {
    %c0_i32 = arith.constant 0 : i32
    %c0_i32_0 = arith.constant 0 : i32
    %c0_i32_1 = arith.constant 0 : i32
    return %c0_i32, %c0_i32_0 : i32, i32
  }
  func.func @transform_3(%arg0: i32, %arg1: i32) -> (i32, i32, i32) {
    %c0_i32 = arith.constant 0 : i32
    %c0_i32_0 = arith.constant 0 : i32
    return %arg0, %c0_i32, %arg1 : i32, i32, i32
  }
}

</mosaic_0001>

<llo_original>
// kernel: tpu_custom_call.1
$region0: #{tpu_custom_call.1}
  #allocation0 [shape = 'u32[]', space=smem, size = 0x4, offset = 0x4, fixed_abs, tag = 'smem constant byte address 0x4 - core index']
  #allocation1 [shape = 'u32[72,128]{1,0:T(1,128)}', space=vmem, size = 0x9000, scoped, tag = 'internal scratch']
  %s0 = inlined_call_operand.hbm [shape: f32[2,8,256], index: 0, kind: input, shape index: {}]
  %s1 = inlined_call_operand.vmem [shape: f32[8,1], index: 1, kind: input, shape index: {}]
  %s2 = inlined_call_operand.vmem [shape: f32[8,1], index: 2, kind: input, shape index: {}]
  %s3 = inlined_call_operand.hbm [shape: f32[2,8,256], index: 3, kind: output, shape index: {}]
  %s4 = sld [smem:[#allocation0]]
  $region49: #{tpu_custom_call.1} parent=0
    _
  %s6 = ssub.s32 1, %s4
  %s7 = scalar_select 0, %s6, %s4
  $region1: #{tpu_custom_call.1} parent=0
    #allocation2 [shape = 'u8[16384]{0}', space=vmem, size = 0x4000, scoped, tag = 'input window, operand 0']
    #allocation3 [shape = 's32[2]{0}', space=sflag, size = 0x8, scoped, tag = 'scoped memory for tpu_custom_call.1']
    #allocation4 [shape = 's32[2]{0}', space=sflag, size = 0x8, scoped, tag = 'scoped memory for tpu_custom_call.1']
    #allocation5 [shape = 'u8[16384]{0}', space=vmem, size = 0x4000, scoped, tag = 'output window, operand 0']
    %8 = vsyncpa [#allocation3], 0
    %s9 = scalar_lea.sflag [#allocation3], 1
    %10 = vsyncpa %s9, 0
    %11 = vsyncpa [#allocation4], 0
    %s12 = scalar_lea.sflag [#allocation4], 1
    %13 = vsyncpa %s12, 0
    loop: start=0, step=1, limit=4
    $region2: #{tpu_custom_call.1} parent=1 // loop_pre_header
      _
    $region3: #{tpu_custom_call.1} parent=1 // loop_header
      %s15 = sphi 0, %s19
      %p16 = scmp.ge.s32.totalorder %s15, 4
      %s22 = sphi 0, %s34
      %s23 = sphi 0, %s30
      %s24 = sphi 0, %s22
      %s25 = sphi 0, %s23
      %s26 = sphi 0, %s24
      %s27 = sphi 0, %s25
      %s39 = sphi 0, %s41
      %s42 = sphi 0, %s39
      %s43 = sphi 0, %s42
      %s59 = sphi 0, %s43
      %s63 = sphi 0, %s63
      %s65 = sphi 0, %s63
      %s66 = sphi 0, %s65
      %s80 = sphi 0, %s66
      %s84 = sphi 0, %s84
      %s86 = sphi 0, %s84
      %s87 = sphi 0, %s86
      %s101 = sphi 0, %s87
      %s109 = sphi 0, %s111
      %s112 = sphi 0, %s109
      %s113 = sphi 0, %s112
      %s129 = sphi 0, %s113
    $region4: #{tpu_custom_call.1} parent=1 // loop_header_branch
      %18 = sbr.rel (%p16) target = $region8
    $region5: #{tpu_custom_call.1} parent=1 // loop_body
      %s20 = ssub.s32 %s15, 1
      %s21 = ssub.s32 %s15, 2
      %s28 = sadd.s32 1, %s23
      %p29 = scmp.ge.s32.totalorder %s28, 1
      %s30 = scalar_select %p29, 0, %s28
      %s31 = sadd.s32 1, %s22
      %s32 = scalar_select %p29, %s31, %s22
      %p33 = scmp.ge.s32.totalorder %s32, 2
      %s34 = scalar_select %p33, 0, %s32
      %s35 = ssub.s32 %s22, %s34
      %s36 = ssub.s32 %s23, %s30
      %s37 = sor.u32 %s35, %s36
      %p38 = scmp.eq.s32.totalorder %s37, 0
      %s40 = sadd.s32 %s39, 1
      %s41 = scalar_select %p38, %s39, %s40
      %p44 = pneg %p38
      %p45 = scmp.eq.s32.totalorder %s15, 1
      %p46 = por %p44, %p45
      %p47 = scmp.ne.s32.totalorder %s39, %s42
      %p48 = scmp.eq.s32.totalorder %s15, 0
      %p49 = por %p47, %p48
      %p50 = scmp.ne.s32.totalorder %s39, %s42
      %p51 = scmp.eq.s32.totalorder %s20, 1
      %p52 = por %p50, %p51
      %p53 = scmp.ne.s32.totalorder %s42, %s43
      %p54 = scmp.eq.s32.totalorder %s20, 0
      %p55 = por %p53, %p54
      %p56 = scmp.ne.s32.totalorder %s42, %s43
      %p57 = scmp.eq.s32.totalorder %s21, 1
      %p58 = por %p56, %p57
      %p60 = scmp.ne.s32.totalorder %s43, %s59
      %p61 = scmp.eq.s32.totalorder %s21, 0
      %p62 = por %p60, %p61
      %s64 = sadd.s32 %s63, 1
      %p67 = scmp.eq.s32.totalorder %s15, 1
      %p68 = scmp.ne.s32.totalorder %s63, %s65
      %p69 = scmp.eq.s32.totalorder %s15, 0
      %p70 = por %p68, %p69
      %p71 = scmp.ne.s32.totalorder %s63, %s65
      %p72 = scmp.eq.s32.totalorder %s20, 1
      %p73 = por %p71, %p72
      %p74 = scmp.ne.s32.totalorder %s65, %s66
      %p75 = scmp.eq.s32.totalorder %s20, 0
      %p76 = por %p74, %p75
      %p77 = scmp.ne.s32.totalorder %s65, %s66
      %p78 = scmp.eq.s32.totalorder %s21, 1
      %p79 = por %p77, %p78
      %p81 = scmp.ne.s32.totalorder %s66, %s80
      %p82 = scmp.eq.s32.totalorder %s21, 0
      %p83 = por %p81, %p82
      %s85 = sadd.s32 %s84, 1
      %p88 = scmp.eq.s32.totalorder %s15, 1
      %p89 = scmp.ne.s32.totalorder %s84, %s86
      %p90 = scmp.eq.s32.totalorder %s15, 0
      %p91 = por %p89, %p90
      %p92 = scmp.ne.s32.totalorder %s84, %s86
      %p93 = scmp.eq.s32.totalorder %s20, 1
      %p94 = por %p92, %p93
      %p95 = scmp.ne.s32.totalorder %s86, %s87
      %p96 = scmp.eq.s32.totalorder %s20, 0
      %p97 = por %p95, %p96
      %p98 = scmp.ne.s32.totalorder %s86, %s87
      %p99 = scmp.eq.s32.totalorder %s21, 1
      %p100 = por %p98, %p99
      %p102 = scmp.ne.s32.totalorder %s87, %s101
      %p103 = scmp.eq.s32.totalorder %s21, 0
      %p104 = por %p102, %p103
      %s105 = ssub.s32 %s22, %s34
      %s106 = ssub.s32 %s23, %s30
      %s107 = sor.u32 %s105, %s106
      %p108 = scmp.eq.s32.totalorder %s107, 0
      %s110 = sadd.s32 %s109, 1
      %s111 = scalar_select %p108, %s109, %s110
      %p114 = pneg %p108
      %p115 = scmp.eq.s32.totalorder %s15, 1
      %p116 = por %p114, %p115
      %p117 = scmp.ne.s32.totalorder %s109, %s112
      %p118 = scmp.eq.s32.totalorder %s15, 0
      %p119 = por %p117, %p118
      %p120 = scmp.ne.s32.totalorder %s109, %s112
      %p121 = scmp.eq.s32.totalorder %s20, 1
      %p122 = por %p120, %p121
      %p123 = scmp.ne.s32.totalorder %s112, %s113
      %p124 = scmp.eq.s32.totalorder %s20, 0
      %p125 = por %p123, %p124
      %p126 = scmp.ne.s32.totalorder %s112, %s113
      %p127 = scmp.eq.s32.totalorder %s21, 1
      %p128 = por %p126, %p127
      %p130 = scmp.ne.s32.totalorder %s113, %s129
      %p131 = scmp.eq.s32.totalorder %s21, 0
      %p132 = por %p130, %p131
      %p133 = scmp.le.s32.totalorder 1, %s15
      %p134 = scmp.lt.s32.totalorder %s15, 3
      %p135 = pnand %p133, %p134
      %p136 = pneg %p135
      // Predicated region
      $region9: #{tpu_custom_call.1} parent=5 // pred_check
        _
      $region10: #{tpu_custom_call.1} parent=5 // pred_check_branch
        %138 = sbr.rel (%p135) target = $region12
      $region11: #{tpu_custom_call.1} parent=5 // pred_region
        %s139 = ssub.s32 %s15, 1
        // Predicated region
        $region13: #{tpu_custom_call.1} parent=11 // pred_check
          %p140 = pneg %p76
        $region14: #{tpu_custom_call.1} parent=11 // pred_check_branch
          %142 = sbr.rel (%p140) target = $region16
        $region15: #{tpu_custom_call.1} parent=11 // pred_region
          _
        $region16: #{tpu_custom_call.1} parent=11 // pred_fallthru
          _
        // Predicated region
        $region17: #{tpu_custom_call.1} parent=11 // pred_check
          %p143 = pneg %p97
        $region18: #{tpu_custom_call.1} parent=11 // pred_check_branch
          %145 = sbr.rel (%p143) target = $region20
        $region19: #{tpu_custom_call.1} parent=11 // pred_region
          _
        $region20: #{tpu_custom_call.1} parent=11 // pred_fallthru
          _
      $region12: #{tpu_custom_call.1} parent=5 // pred_fallthru
        _
      %p146 = scmp.lt.s32.totalorder %s15, 2
      // Predicated region
      $region21: #{tpu_custom_call.1} parent=5 // pred_check
        %p147 = pneg %p146
      $region22: #{tpu_custom_call.1} parent=5 // pred_check_branch
        %149 = sbr.rel (%p147) target = $region24
      $region23: #{tpu_custom_call.1} parent=5 // pred_region
        // Predicated region
        $region25: #{tpu_custom_call.1} parent=23 // pred_check
          %p150 = pneg %p49
        $region26: #{tpu_custom_call.1} parent=23 // pred_check_branch
          %152 = sbr.rel (%p150) target = $region28
        $region27: #{tpu_custom_call.1} parent=23 // pred_region
          %s153 = sand.u32 %s39, 1
          %s154 = scalar_lea.sflag [#allocation3], %s153
          %s155 = sand.u32 %s39, 1
          %s156 = smul.addr %s155, 16
          %s157 = scalar_lea.vmem [#allocation2], %s156
          %s158 = smul.u32 2, %s23
          %160 = vsyncadd %s154, 0
          %s161 = smul.addr %s22, 2
          %s162 = sadd.s32 %s158, %s161
          %s163 = smul.addr %s162, 8
          %s164 = scalar_lea.hbm %s0, %s163
          %s166 = sshll.u32 %s164, 4
          %s167 = int_to_ptr.hbm [resolvable:$true] %s166
          %s168 = sshll.u32 %s157, 4
          %s169 = int_to_ptr.vmem [resolvable:$true] %s168
          %171 = dma.hbm_to_vmem [thread:$0]  %s167, 256, %s169, %s154
        $region28: #{tpu_custom_call.1} parent=23 // pred_fallthru
          _
      $region24: #{tpu_custom_call.1} parent=5 // pred_fallthru
        _
      %p172 = scmp.le.s32.totalorder 1, %s15
      %p173 = scmp.lt.s32.totalorder %s15, 3
      %p174 = pnand %p172, %p173
      %p175 = pneg %p174
      // Predicated region
      $region29: #{tpu_custom_call.1} parent=5 // pred_check
        _
      $region30: #{tpu_custom_call.1} parent=5 // pred_check_branch
        %177 = sbr.rel (%p174) target = $region32
      $region31: #{tpu_custom_call.1} parent=5 // pred_region
        %s178 = ssub.s32 %s15, 1
        %s179 = sand.u32 %s42, 1
        %s180 = scalar_lea.sflag [#allocation3], %s179
        %s181 = sand.u32 %s42, 1
        %s182 = smul.addr %s181, 16
        %s183 = scalar_lea.vmem [#allocation2], %s182
        // Predicated region
        $region33: #{tpu_custom_call.1} parent=31 // pred_check
          %p184 = pneg %p55
        $region34: #{tpu_custom_call.1} parent=31 // pred_check_branch
          %186 = sbr.rel (%p184) target = $region36
        $region35: #{tpu_custom_call.1} parent=31 // pred_region
          %188 = dma.done %s180, 256
        $region36: #{tpu_custom_call.1} parent=31 // pred_fallthru
          _
        %s189 = sand.u32 %s42, 1
        %s190 = scalar_lea.sflag [#allocation3], %s189
        %s191 = sand.u32 %s42, 1
        %s192 = smul.addr %s191, 16
        %s193 = scalar_lea.vmem [#allocation2], %s192
        %p194 = pneg %p55
        %p195 = pneg %p52
        %p196 = pneg %p76
        %p197 = pneg %p73
        %p198 = pneg %p97
        %p199 = pneg %p94
        %p200 = pneg %p125
        %p201 = pneg %p122
        %s202 = sand.u32 %s112, 1
        %s203 = scalar_lea.sflag [#allocation4], %s202
        %s204 = sand.u32 %s112, 1
        %s205 = smul.addr %s204, 16
        %s206 = scalar_lea.vmem [#allocation5], %s205
        %s207 = smul.u32 2, %s25
        %s208 = smul.u32 2, %s25
        %v209 = vld [vmem:[%s183] sm:$0xff]
        %v210 = vld [vmem:[%s183 + $0x8] sm:$0xff]
        %v211 = vrot.slane %v209, 4
        %v212 = vadd.f32 %v209, %v211
        %v213 = vrot.slane %v212, 2
        %v214 = vadd.f32 %v212, %v213
        %v215 = vrot.slane %v214, 1
        %v216 = vadd.f32 %v214, %v215
        %v217 = vrot.slane %v210, 4
        %v218 = vadd.f32 %v210, %v217
        %v219 = vrot.slane %v218, 2
        %v220 = vadd.f32 %v218, %v219
        %v221 = vrot.slane %v220, 1
        %v222 = vadd.f32 %v220, %v221
        %v223 = vrcp.pop 8.0
        %v224 = vmul.f32 8.0, %v223
        %v225 = vsub.f32 1.0, %v224
        %v226 = vmul.f32 %v223, %v225
        %v227 = vadd.f32 %v223, %v226
        %vm228 = vweird.f32 %v223
        %v229 = vsel %vm228, %v223, %v227
        %v230 = vmul.f32 %v216, %v229
        %v231 = vmul.f32 %v222, %v229
        %v232 = vsub.f32 %v209, %v230
        %v233 = vsub.f32 %v210, %v231
        %v234 = vmul.f32 %v232, %v232
        %v235 = vmul.f32 %v233, %v233
        %v236 = vrot.slane %v234, 4
        %v237 = vadd.f32 %v234, %v236
        %v238 = vrot.slane %v237, 2
        %v239 = vadd.f32 %v237, %v238
        %v240 = vrot.slane %v239, 1
        %v241 = vadd.f32 %v239, %v240
        %v242 = vrot.slane %v235, 4
        %v243 = vadd.f32 %v235, %v242
        %v244 = vrot.slane %v243, 2
        %v245 = vadd.f32 %v243, %v244
        %v246 = vrot.slane %v245, 1
        %v247 = vadd.f32 %v245, %v246
        %v248 = vmul.f32 %v241, %v229
        %v249 = vmul.f32 %v247, %v229
        %v250 = vadd.f32 %v248, 1e-05
        %v251 = vadd.f32 %v249, 1e-05
        %v252 = vrsqrt.pop %v250
        %v253 = vmul.f32 %v252, %v250
        %v254 = vmul.f32 %v253, %v252
        %v255 = vmul.f32 0.5, %v254
        %v256 = vsub.f32 1.5, %v255
        %v257 = vmul.f32 %v252, %v256
        %vm258 = vweird.f32 %v250
        %vm259 = vweird.f32 %v252
        %vm260 = vmor %vm258, %vm259
        %v261 = vsel %vm260, %v252, %v257
        %v262 = vrsqrt.pop %v251
        %v263 = vmul.f32 %v262, %v251
        %v264 = vmul.f32 %v263, %v262
        %v265 = vmul.f32 0.5, %v264
        %v266 = vsub.f32 1.5, %v265
        %v267 = vmul.f32 %v262, %v266
        %vm268 = vweird.f32 %v251
        %vm269 = vweird.f32 %v262
        %vm270 = vmor %vm268, %vm269
        %v271 = vsel %vm270, %v262, %v267
        %v272 = vmul.f32 %v232, %v261
        %v273 = vmul.f32 %v233, %v271
        %v274 = vld [vmem:[%s1] sm:$0xff]
        %276 = vset.pattern.permute.xlu0 0
        %277 = vperm.xlu0 %276, %v274
        %v278 = vpop.permute.xlu0 %277
        %v280 = vmul.f32 %v272, %v278
        %v281 = vmul.f32 %v273, %v278
        %v282 = vld [vmem:[%s2] sm:$0xff]
        %284 = vset.pattern.permute.xlu0 0
        %285 = vperm.xlu0 %284, %v282
        %v286 = vpop.permute.xlu0 %285
        %v288 = vadd.f32 %v280, %v286
        %v289 = vadd.f32 %v281, %v286
        %290 = vst [vmem:[%s206] sm:$0xff] %v288
        %291 = vst [vmem:[%s206 + $0x8] sm:$0xff] %v289
        %s292 = sand.u32 %s112, 1
        %s293 = scalar_lea.sflag [#allocation4], %s292
        %s294 = sand.u32 %s112, 1
        %s295 = smul.addr %s294, 16
        %s296 = scalar_lea.vmem [#allocation5], %s295
        // Predicated region
        $region37: #{tpu_custom_call.1} parent=31 // pred_check
          %p297 = pneg %p122
        $region38: #{tpu_custom_call.1} parent=31 // pred_check_branch
          %299 = sbr.rel (%p297) target = $region40
        $region39: #{tpu_custom_call.1} parent=31 // pred_region
          %s300 = smul.u32 2, %s25
          %302 = vsyncadd %s293, 0
          %s303 = smul.addr %s24, 2
          %s304 = sadd.s32 %s300, %s303
          %s305 = smul.addr %s304, 8
          %s306 = scalar_lea.hbm %s3, %s305
          %s308 = sshll.u32 %s296, 4
          %s309 = int_to_ptr.vmem [resolvable:$true] %s308
          %s310 = sshll.u32 %s306, 4
          %s311 = int_to_ptr.hbm [resolvable:$true] %s310
          %313 = dma.vmem_to_hbm [thread:$0]  %s309, 256, %s311, %s293
        $region40: #{tpu_custom_call.1} parent=31 // pred_fallthru
          _
      $region32: #{tpu_custom_call.1} parent=5 // pred_fallthru
        _
      %p314 = scmp.le.s32.totalorder 2, %s15
      // Predicated region
      $region41: #{tpu_custom_call.1} parent=5 // pred_check
        %p315 = pneg %p314
      $region42: #{tpu_custom_call.1} parent=5 // pred_check_branch
        %317 = sbr.rel (%p315) target = $region44
      $region43: #{tpu_custom_call.1} parent=5 // pred_region
        %s318 = ssub.s32 %s15, 2
        // Predicated region
        $region45: #{tpu_custom_call.1} parent=43 // pred_check
          %p319 = pneg %p128
        $region46: #{tpu_custom_call.1} parent=43 // pred_check_branch
          %321 = sbr.rel (%p319) target = $region48
        $region47: #{tpu_custom_call.1} parent=43 // pred_region
          %s322 = sand.u32 %s113, 1
          %s323 = scalar_lea.sflag [#allocation4], %s322
          %s324 = sand.u32 %s113, 1
          %s325 = smul.addr %s324, 16
          %s326 = scalar_lea.vmem [#allocation5], %s325
          %328 = dma.done %s323, 256
        $region48: #{tpu_custom_call.1} parent=43 // pred_fallthru
          _
      $region44: #{tpu_custom_call.1} parent=5 // pred_fallthru
        _
    $region6: #{tpu_custom_call.1} parent=1 // loop_footer
      %s19 = sadd.s32 1, %s15
    $region7: #{tpu_custom_call.1} parent=1 // loop_footer_branch
      %14 = sbr.rel target = $region3
    $region8: #{tpu_custom_call.1} parent=1 // loop_exit
      _
    %329 = vsyncpa [#allocation3], 1
    %s330 = scalar_lea.sflag [#allocation3], 1
    %331 = vsyncpa %s330, 1
    %332 = vsyncpa [#allocation4], 1
    %s333 = scalar_lea.sflag [#allocation4], 1
    %334 = vsyncpa %s333, 1

</llo_original>
